<compile_context>
chip_gen: v6e
topology: v6e:2x2x1
jax: 0.10.0
libtpu: 0.0.40
codegen_flags: <defaults>
</compile_context>

<pallas_src>
import functools

import numpy as np

import jax
import jax.numpy as jnp
from jax.experimental import pallas as pl
from jax.experimental.pallas import tpu as pltpu


BN_EPS = 1e-5
LANE = 128


# ----------------------------------------------------------------------------
# Constant matrices (static shapes, built with numpy)
# ----------------------------------------------------------------------------
def _adaptive_pool_matrix(out_size, in_size):
    """PyTorch AdaptiveAvgPool1d as a (out_size, in_size) averaging matrix."""
    P = np.zeros((out_size, in_size), np.float32)
    for p in range(out_size):
        s = (p * in_size) // out_size
        e = -(-((p + 1) * in_size) // out_size)  # ceil division
        P[p, s:e] = 1.0 / float(e - s)
    return P


def _bilinear_matrix_ac(out_size, in_size):
    """1-D bilinear interpolation (align_corners=True) as (out_size, in_size)."""
    U = np.zeros((out_size, in_size), np.float32)
    if in_size == 1:
        U[:, 0] = 1.0
        return U
    for i in range(out_size):
        src = i * (in_size - 1) / (out_size - 1)
        i0 = min(int(np.floor(src)), in_size - 1)
        i1 = min(i0 + 1, in_size - 1)
        w1 = src - i0
        U[i, i0] += 1.0 - w1
        U[i, i1] += w1
    return U


def _build_packed_constants(H, W, bin_sizes, bc):
    """Branch-concatenated pooling / upsample / mask constants.

    All branches share one packed "bins" axis of length S = sum(b*b),
    padded once to a lane multiple (128).  PT: pooled = x(C,HW) @ PT;
    UT: up = y(O,S_pad) @ UT; MASK keeps row-block i paired with column
    block i (the off-diagonal conv outputs are garbage and must be zeroed).
    """
    HW = H * W
    areas = [b * b for b in bin_sizes]
    S = sum(areas)
    S_pad = ((S + LANE - 1) // LANE) * LANE
    nb = len(bin_sizes)

    PT = np.zeros((HW, S_pad), np.float32)
    UT = np.zeros((S_pad, HW), np.float32)
    MASK = np.zeros((nb * bc, S_pad), np.float32)

    off = 0
    for i, b in enumerate(bin_sizes):
        P2 = np.kron(_adaptive_pool_matrix(b, H),
                     _adaptive_pool_matrix(b, W))            # (b*b, HW)
        U2 = np.kron(_bilinear_matrix_ac(H, b),
                     _bilinear_matrix_ac(W, b))               # (HW, b*b)
        PT[:, off:off + areas[i]] = P2.T
        UT[off:off + areas[i], :] = U2.T
        MASK[i * bc:(i + 1) * bc, off:off + areas[i]] = 1.0
        off += areas[i]

    return jnp.asarray(PT), jnp.asarray(UT), jnp.asarray(MASK), S_pad


# ----------------------------------------------------------------------------
# Fused Pallas kernel: all branches + concat for NB images per grid step
# ----------------------------------------------------------------------------
def _psp_kernel(x_ref, pt_ref, ut_ref, w_ref, b_ref, mask_ref, o_ref,
                *, nb_imgs, C, O):
    # x_ref : (NB, C, HW)      pt_ref  : (HW, S_pad)    ut_ref: (S_pad, HW)
    # w_ref : (O, C)           b_ref   : (O, 1)         mask_ref: (O, S_pad)
    # o_ref : (NB, C + O, HW)
    NB = nb_imgs
    HW = x_ref.shape[-1]
    x = x_ref[...]                                                 # (NB, C, HW)

    # Stage 1: all-branch adaptive average pooling as ONE matmul
    # (NB*C folded into M; pooling matrices are shared across images/channels).
    pooled = jnp.dot(x.reshape(NB * C, HW), pt_ref[...],
                     preferred_element_type=jnp.float32)           # (NB*C, S_pad)

    w = w_ref[...]                                                 # (O, C)
    bias = b_ref[...]                                              # (O, 1)
    mask = mask_ref[...]                                           # (O, S_pad)
    ut = ut_ref[...]                                               # (S_pad, HW)

    for n in range(NB):                                            # static unroll, NB small
        p_n = pooled[n * C:(n + 1) * C, :]                         # (C, S_pad), aligned slice
        # Stage 2: all-branch BN-folded 1x1 conv + bias + ReLU, then zero the
        # off-diagonal (wrong-branch) blocks and the padded columns.
        y = jnp.dot(w, p_n, preferred_element_type=jnp.float32) + bias   # (O, S_pad)
        y = jnp.maximum(y, 0.0) * mask
        # Stage 3: all-branch bilinear upsample (align_corners=True) as ONE matmul.
        up = jnp.dot(y, ut, preferred_element_type=jnp.float32)    # (O, HW)

        # Direct aligned stores (no in-kernel concatenate): rows [0,C) are the
        # input pass-through, rows [C, C+O) the stacked branch outputs.
        o_ref[n, pl.ds(0, C), :] = x[n]
        o_ref[n, pl.ds(C, O), :] = up


# ----------------------------------------------------------------------------
# BN folding + forward wrapper
# ----------------------------------------------------------------------------
def _fold_bn(w, b, gamma, beta, mean, var):
    scale = gamma / jnp.sqrt(var + BN_EPS)                         # (bc,)
    return w * scale[:, None], (b - mean) * scale + beta


def _pick_images_per_block(N, C):
    """Largest divisor of N that targets ~128 rows in the pool matmul's M dim
    while keeping >= 2 grid steps when N >= 2 (v7x has 2 TensorCores)."""
    if N <= 1:
        return 1
    target = max(1, 128 // max(C, 1))
    best = 1
    for d in range(1, N):
        if N % d == 0 and d <= target and (N // d) >= 2:
            best = d
    return best


def psp_forward(x_nchw, params, bin_sizes=(1, 2, 4, 8)):
    N, C, H, W = x_nchw.shape
    bc = C // 4
    nb = len(bin_sizes)
    HW = H * W
    O = nb * bc
    Cout = C + O

    pt, ut, mask, S_pad = _build_packed_constants(H, W, bin_sizes, bc)

    # Fold eval-mode BN into the 1x1 conv; stack all branches' weights.
    w_rows, b_rows = [], []
    for i in range(nb):
        wf, bf = _fold_bn(*params["conv"][i], *params["bn"][i])
        w_rows.append(wf)
        b_rows.append(bf)
    w_all = jnp.concatenate(w_rows, axis=0)                        # (O, C)
    b_all = jnp.concatenate(b_rows, axis=0)[:, None]               # (O, 1)

    nb_imgs = _pick_images_per_block(N, C)
    grid = (N // nb_imgs,)

    x2 = x_nchw.reshape(N, C, HW).astype(jnp.float32)              # free reshape, no transpose

    kernel = functools.partial(_psp_kernel, nb_imgs=nb_imgs, C=C, O=O)

    out = pl.pallas_call(
        kernel,
        out_shape=jax.ShapeDtypeStruct((N, Cout, HW), jnp.float32),
        grid=grid,
        in_specs=[
            pl.BlockSpec((nb_imgs, C, HW), lambda n: (n, 0, 0)),
            # Grid-invariant constants (index map constant across the grid).
            pl.BlockSpec((HW, S_pad), lambda n: (0, 0)),
            pl.BlockSpec((S_pad, HW), lambda n: (0, 0)),
            pl.BlockSpec((O, C), lambda n: (0, 0)),
            pl.BlockSpec((O, 1), lambda n: (0, 0)),
            pl.BlockSpec((O, S_pad), lambda n: (0, 0)),
        ],
        out_specs=pl.BlockSpec((nb_imgs, Cout, HW), lambda n: (n, 0, 0)),
        compiler_params=pltpu.CompilerParams(
            dimension_semantics=("parallel",)),
    )(x2, pt, ut, w_all, b_all, mask)

    return out.reshape(N, Cout, H, W)                              # free reshape back to NCHW


# ----------------------------------------------------------------------------
# Deterministic synthetic parameters (eval-mode BN stats)
# ----------------------------------------------------------------------------
def init_params(key, in_channels, bin_sizes):
    bc = in_channels // 4
    params = {"conv": [], "bn": []}
    keys = jax.random.split(key, 2 * len(bin_sizes))
    for i in range(len(bin_sizes)):
        kw, kb = jax.random.split(keys[2 * i])
        w = jax.random.normal(kw, (bc, in_channels), jnp.float32) * 0.1
        b = jax.random.normal(kb, (bc,), jnp.float32) * 0.05
        k1, k2, k3, k4 = jax.random.split(keys[2 * i + 1], 4)
        gamma = 1.0 + 0.1 * jax.random.normal(k1, (bc,), jnp.float32)
        beta = 0.05 * jax.random.normal(k2, (bc,), jnp.float32)
        mean = 0.1 * jax.random.normal(k3, (bc,), jnp.float32)
        var = 1.0 + 0.1 * jnp.abs(jax.random.normal(k4, (bc,), jnp.float32))
        params["conv"].append((w, b))
        params["bn"].append((gamma, beta, mean, var))
    return params


# ----------------------------------------------------------------------------
# Pure-JAX reference (independent formulation: reshape-mean pool + gather interp)
# NOTE: reshape-mean pooling matches AdaptiveAvgPool2d only when H, W are
# divisible by every bin size — true for the test shapes below.
# ----------------------------------------------------------------------------
def _bilinear_upsample_ac_ref(y, H, W):
    bh, bw = y.shape[2], y.shape[3]

    def iw(out_size, in_size):
        if in_size == 1:
            z = np.zeros(out_size, np.int32)
            return z, z, np.zeros(out_size, np.float32)
        src = np.arange(out_size, dtype=np.float64) * (in_size - 1) / (out_size - 1)
        i0 = np.minimum(np.floor(src).astype(np.int32), in_size - 1)
        i1 = np.minimum(i0 + 1, in_size - 1)
        return i0, i1, (src - i0).astype(np.float32)

    r0, r1, wr = iw(H, bh)
    c0, c1, wc = iw(W, bw)
    top = (y[:, :, r0, :] * (1 - wr)[None, None, :, None]
           + y[:, :, r1, :] * wr[None, None, :, None])
    return (top[:, :, :, c0] * (1 - wc)[None, None, None, :]
            + top[:, :, :, c1] * wc[None, None, None, :])


def psp_reference(x, params, bin_sizes=(1, 2, 4, 8)):
    N, C, H, W = x.shape
    outs = [x]
    for i, b in enumerate(bin_sizes):
        w, bias = params["conv"][i]
        gamma, beta, mean, var = params["bn"][i]
        pooled = x.reshape(N, C, b, H // b, b, W // b).mean(axis=(3, 5))
        y = jnp.einsum("oc,ncpq->nopq", w, pooled) + bias[None, :, None, None]
        y = (gamma[None, :, None, None] * (y - mean[None, :, None, None])
             / jnp.sqrt(var + BN_EPS)[None, :, None, None]
             + beta[None, :, None, None])
        y = jnp.maximum(y, 0.0)
        outs.append(_bilinear_upsample_ac_ref(y, H, W))
    return jnp.concatenate(outs, axis=1)


# ----------------------------------------------------------------------------
if __name__ == "__main__":
    key = jax.random.PRNGKey(0)
    k_x, k_p = jax.random.split(key)

    N, C, H, W = 2, 16, 16, 16                 # branch_channels = C // 4 = 4
    bin_sizes = (1, 2, 4, 8)
    x = jax.random.normal(k_x, (N, C, H, W), jnp.float32)   # NCHW like PyTorch

    params = init_params(k_p, C, bin_sizes)

    out = jax.block_until_ready(psp_forward(x, params, bin_sizes))
    ref = jax.block_until_ready(psp_reference(x, params, bin_sizes))

    assert out.shape == (N, C + len(bin_sizes) * (C // 4), H, W)
    assert jnp.allclose(out, ref, atol=1e-4, rtol=1e-4), (
        float(jnp.max(jnp.abs(out - ref))))

    print("KERNEL_OK")
</pallas_src>

<mosaic_0001>
module attributes {stable_mosaic.version = 11 : i64} {
  func.func @_psp_kernel(%arg0: i32, %arg1: memref<1x16x256xf32, #tpu.memory_space<vmem>>, %arg2: memref<256x128xf32, #tpu.memory_space<vmem>>, %arg3: memref<128x256xf32, #tpu.memory_space<vmem>>, %arg4: memref<16x16xf32, #tpu.memory_space<vmem>>, %arg5: memref<16x1xf32, #tpu.memory_space<vmem>>, %arg6: memref<16x128xf32, #tpu.memory_space<vmem>>, %arg7: memref<1x32x256xf32, #tpu.memory_space<vmem>>) attributes {dimension_semantics = [#tpu.dimension_semantics<parallel>], iteration_bounds = array<i64: 2>, scalar_prefetch = 0 : i64, scratch_operands = 0 : i64, tpu.core_type = #tpu.core_type<tc>, window_params = [{transform_indices = @transform_0, window_bounds = array<i64: 1, 16, 256>}, {pipeline_mode = #tpu.pipeline_mode<synchronous>, transform_indices = @transform_1, window_bounds = array<i64: 256, 128>}, {pipeline_mode = #tpu.pipeline_mode<synchronous>, transform_indices = @transform_2, window_bounds = array<i64: 128, 256>}, {pipeline_mode = #tpu.pipeline_mode<synchronous>, transform_indices = @transform_3, window_bounds = array<i64: 16, 16>}, {pipeline_mode = #tpu.pipeline_mode<synchronous>, transform_indices = @transform_4, window_bounds = array<i64: 16, 1>}, {pipeline_mode = #tpu.pipeline_mode<synchronous>, transform_indices = @transform_5, window_bounds = array<i64: 16, 128>}, {transform_indices = @transform_6, window_bounds = array<i64: 1, 32, 256>}]} {
    %c0 = arith.constant 0 : index
    %c0_0 = arith.constant 0 : index
    %c0_1 = arith.constant 0 : index
    %0 = vector.load %arg1[%c0, %c0_0, %c0_1] : memref<1x16x256xf32, #tpu.memory_space<vmem>>, vector<1x16x256xf32>
    %1 = vector.shape_cast %0 : vector<1x16x256xf32> to vector<16x256xf32>
    %c0_2 = arith.constant 0 : index
    %c0_3 = arith.constant 0 : index
    %2 = vector.load %arg2[%c0_2, %c0_3] : memref<256x128xf32, #tpu.memory_space<vmem>>, vector<256x128xf32>
    %cst = arith.constant dense<0.000000e+00> : vector<16x128xf32>
    %3 = tpu.matmul %1, %2, %cst {dimension_numbers = #tpu.dot_dimension_numbers<[1], [0], [0], [1], [0, 0, 1, 1], [], []>} : vector<16x256xf32>, vector<256x128xf32>, vector<16x128xf32> -> vector<16x128xf32>
    %c0_4 = arith.constant 0 : index
    %c0_5 = arith.constant 0 : index
    %4 = vector.load %arg4[%c0_4, %c0_5] : memref<16x16xf32, #tpu.memory_space<vmem>>, vector<16x16xf32>
    %c0_6 = arith.constant 0 : index
    %c0_7 = arith.constant 0 : index
    %5 = vector.load %arg5[%c0_6, %c0_7] : memref<16x1xf32, #tpu.memory_space<vmem>>, vector<16x1xf32>
    %c0_8 = arith.constant 0 : index
    %c0_9 = arith.constant 0 : index
    %6 = vector.load %arg6[%c0_8, %c0_9] : memref<16x128xf32, #tpu.memory_space<vmem>>, vector<16x128xf32>
    %c0_10 = arith.constant 0 : index
    %c0_11 = arith.constant 0 : index
    %7 = vector.load %arg3[%c0_10, %c0_11] : memref<128x256xf32, #tpu.memory_space<vmem>>, vector<128x256xf32>
    %cst_12 = arith.constant dense<0.000000e+00> : vector<16x128xf32>
    %8 = tpu.matmul %4, %3, %cst_12 {dimension_numbers = #tpu.dot_dimension_numbers<[1], [0], [0], [1], [0, 0, 1, 1], [], []>} : vector<16x16xf32>, vector<16x128xf32>, vector<16x128xf32> -> vector<16x128xf32>
    %9 = vector.broadcast %5 : vector<16x1xf32> to vector<16x128xf32>
    %10 = arith.addf %8, %9 : vector<16x128xf32>
    %cst_13 = arith.constant 0.000000e+00 : f32
    %11 = vector.broadcast %cst_13 : f32 to vector<16x128xf32>
    %12 = arith.maximumf %10, %11 : vector<16x128xf32>
    %13 = arith.mulf %12, %6 : vector<16x128xf32>
    %cst_14 = arith.constant dense<0.000000e+00> : vector<16x256xf32>
    %14 = tpu.matmul %13, %7, %cst_14 {dimension_numbers = #tpu.dot_dimension_numbers<[1], [0], [0], [1], [0, 0, 1, 1], [], []>} : vector<16x128xf32>, vector<128x256xf32>, vector<16x256xf32> -> vector<16x256xf32>
    %15 = vector.shape_cast %0 : vector<1x16x256xf32> to vector<16x256xf32>
    %c0_15 = arith.constant 0 : index
    %c0_16 = arith.constant 0 : index
    %c0_17 = arith.constant 0 : index
    %16 = vector.load %arg7[%c0_15, %c0_16, %c0_17] : memref<1x32x256xf32, #tpu.memory_space<vmem>>, vector<1x16x256xf32>
    %17 = vector.shape_cast %16 : vector<1x16x256xf32> to vector<16x256xf32>
    %18 = vector.shape_cast %15 : vector<16x256xf32> to vector<1x16x256xf32>
    tpu.vector_store %arg7[%c0_15, %c0_16, %c0_17], %18 {strides = array<i32>} : memref<1x32x256xf32, #tpu.memory_space<vmem>>, vector<1x16x256xf32>,
    %c0_18 = arith.constant 0 : index
    %c16 = arith.constant 16 : index
    %c0_19 = arith.constant 0 : index
    %19 = vector.load %arg7[%c0_18, %c16, %c0_19] : memref<1x32x256xf32, #tpu.memory_space<vmem>>, vector<1x16x256xf32>
    %20 = vector.shape_cast %19 : vector<1x16x256xf32> to vector<16x256xf32>
    %21 = vector.shape_cast %14 : vector<16x256xf32> to vector<1x16x256xf32>
    tpu.vector_store %arg7[%c0_18, %c16, %c0_19], %21 {strides = array<i32>} : memref<1x32x256xf32, #tpu.memory_space<vmem>>, vector<1x16x256xf32>,
    return
  }
  func.func @transform_0(%arg0: i32) -> (i32, i32, i32) {
    %c0_i32 = arith.constant 0 : i32
    %c0_i32_0 = arith.constant 0 : i32
    %c0_i32_1 = arith.constant 0 : i32
    return %arg0, %c0_i32, %c0_i32_0 : i32, i32, i32
  }
  func.func @transform_1(%arg0: i32) -> (i32, i32) {
    %c0_i32 = arith.constant 0 : i32
    %c0_i32_0 = arith.constant 0 : i32
    %c0_i32_1 = arith.constant 0 : i32
    return %c0_i32, %c0_i32_0 : i32, i32
  }
  func.func @transform_2(%arg0: i32) -> (i32, i32) {
    %c0_i32 = arith.constant 0 : i32
    %c0_i32_0 = arith.constant 0 : i32
    %c0_i32_1 = arith.constant 0 : i32
    return %c0_i32, %c0_i32_0 : i32, i32
  }
  func.func @transform_3(%arg0: i32) -> (i32, i32) {
    %c0_i32 = arith.constant 0 : i32
    %c0_i32_0 = arith.constant 0 : i32
    %c0_i32_1 = arith.constant 0 : i32
    return %c0_i32, %c0_i32_0 : i32, i32
  }
  func.func @transform_4(%arg0: i32) -> (i32, i32) {
    %c0_i32 = arith.constant 0 : i32
    %c0_i32_0 = arith.constant 0 : i32
    %c0_i32_1 = arith.constant 0 : i32
    return %c0_i32, %c0_i32_0 : i32, i32
  }
  func.func @transform_5(%arg0: i32) -> (i32, i32) {
    %c0_i32 = arith.constant 0 : i32
    %c0_i32_0 = arith.constant 0 : i32
    %c0_i32_1 = arith.constant 0 : i32
    return %c0_i32, %c0_i32_0 : i32, i32
  }
  func.func @transform_6(%arg0: i32) -> (i32, i32, i32) {
    %c0_i32 = arith.constant 0 : i32
    %c0_i32_0 = arith.constant 0 : i32
    %c0_i32_1 = arith.constant 0 : i32
    return %arg0, %c0_i32, %c0_i32_0 : i32, i32, i32
  }
}

</mosaic_0001>

<llo_original>
// kernel: tpu_custom_call.1
$region0: #{tpu_custom_call.1}
  #allocation0 [shape = 'u32[]', space=smem, size = 0x4, offset = 0x4, fixed_abs, tag = 'smem constant byte address 0x4 - core index']
  #allocation1 [shape = 'u32[144,128]{1,0:T(1,128)}', space=vmem, size = 0x12000, scoped, tag = 'internal scratch']
  %s0 = inlined_call_operand.hbm [shape: f32[2,16,256], index: 0, kind: input, shape index: {}]
  %s1 = inlined_call_operand.hbm [shape: f32[256,128], index: 1, kind: input, shape index: {}]
  %s2 = inlined_call_operand.hbm [shape: f32[128,256], index: 2, kind: input, shape index: {}]
  %s3 = inlined_call_operand.vmem [shape: f32[16,16], index: 3, kind: input, shape index: {}]
  %s4 = inlined_call_operand.vmem [shape: f32[16,1], index: 4, kind: input, shape index: {}]
  %s5 = inlined_call_operand.hbm [shape: f32[16,128], index: 5, kind: input, shape index: {}]
  %s6 = inlined_call_operand.hbm [shape: f32[2,32,256], index: 6, kind: output, shape index: {}]
  %s7 = sld [smem:[#allocation0]]
  $region73: #{tpu_custom_call.1} parent=0
    _
  %s9 = ssub.s32 1, %s7
  %s10 = scalar_select 0, %s9, %s7
  $region1: #{tpu_custom_call.1} parent=0
    #allocation2 [shape = 'u8[32768]{0}', space=vmem, size = 0x8000, scoped, tag = 'input window, operand 0']
    #allocation3 [shape = 's32[2]{0}', space=sflag, size = 0x8, scoped, tag = 'scoped memory for tpu_custom_call.1']
    #allocation4 [shape = 's32[2]{0}', space=sflag, size = 0x8, scoped, tag = 'scoped memory for tpu_custom_call.1']
    #allocation5 [shape = 'u8[131072]{0}', space=vmem, size = 0x20000, scoped, tag = 'input window, operand 1, single buffered']
    #allocation6 [shape = 's32[1]{0}', space=sflag, size = 0x4, scoped, tag = 'scoped memory for tpu_custom_call.1']
    #allocation7 [shape = 'u8[131072]{0}', space=vmem, size = 0x20000, scoped, tag = 'input window, operand 2, single buffered']
    #allocation8 [shape = 'u8[8192]{0}', space=vmem, size = 0x2000, scoped, tag = 'input window, operand 5, single buffered']
    #allocation9 [shape = 's32[1]{0}', space=sflag, size = 0x4, scoped, tag = 'scoped memory for tpu_custom_call.1']
    #allocation10 [shape = 'u8[65536]{0}', space=vmem, size = 0x10000, scoped, tag = 'output window, operand 0']
    %11 = vsyncpa [#allocation3], 0
    %s12 = scalar_lea.sflag [#allocation3], 1
    %13 = vsyncpa %s12, 0
    %14 = vsyncpa [#allocation6], 0
    %15 = vsyncpa [#allocation9], 0
    %16 = vsyncpa [#allocation4], 0
    %s17 = scalar_lea.sflag [#allocation4], 1
    %18 = vsyncpa %s17, 0
    loop: start=0, step=1, limit=4
    $region2: #{tpu_custom_call.1} parent=1 // loop_pre_header
      _
    $region3: #{tpu_custom_call.1} parent=1 // loop_header
      %s20 = sphi 0, %s24
      %p21 = scmp.ge.s32.totalorder %s20, 4
      %s30 = sphi 0, %s32
      %s33 = sphi 0, %s30
      %s34 = sphi 0, %s33
      %s50 = sphi 0, %s34
      %s54 = sphi 0, %s54
      %s56 = sphi 0, %s54
      %s57 = sphi 0, %s56
      %s71 = sphi 0, %s57
      %s75 = sphi 0, %s75
      %s77 = sphi 0, %s75
      %s78 = sphi 0, %s77
      %s92 = sphi 0, %s78
      %s96 = sphi 0, %s96
      %s98 = sphi 0, %s96
      %s99 = sphi 0, %s98
      %s113 = sphi 0, %s99
      %s117 = sphi 0, %s117
      %s119 = sphi 0, %s117
      %s120 = sphi 0, %s119
      %s134 = sphi 0, %s120
      %s138 = sphi 0, %s138
      %s140 = sphi 0, %s138
      %s141 = sphi 0, %s140
      %s155 = sphi 0, %s141
      %s161 = sphi 0, %s163
      %s164 = sphi 0, %s161
      %s165 = sphi 0, %s164
      %s181 = sphi 0, %s165
    $region4: #{tpu_custom_call.1} parent=1 // loop_header_branch
      %23 = sbr.rel (%p21) target = $region8
    $region5: #{tpu_custom_call.1} parent=1 // loop_body
      %s25 = ssub.s32 %s20, 1
      %s26 = ssub.s32 %s20, 2
      %s27 = sadd.s32 %s20, 1
      %s28 = ssub.s32 %s20, %s27
      %p29 = scmp.eq.s32.totalorder %s28, 0
      %s31 = sadd.s32 %s30, 1
      %s32 = scalar_select %p29, %s30, %s31
      %p35 = pneg %p29
      %p36 = scmp.eq.s32.totalorder %s20, 1
      %p37 = por %p35, %p36
      %p38 = scmp.ne.s32.totalorder %s30, %s33
      %p39 = scmp.eq.s32.totalorder %s20, 0
      %p40 = por %p38, %p39
      %p41 = scmp.ne.s32.totalorder %s30, %s33
      %p42 = scmp.eq.s32.totalorder %s25, 1
      %p43 = por %p41, %p42
      %p44 = scmp.ne.s32.totalorder %s33, %s34
      %p45 = scmp.eq.s32.totalorder %s25, 0
      %p46 = por %p44, %p45
      %p47 = scmp.ne.s32.totalorder %s33, %s34
      %p48 = scmp.eq.s32.totalorder %s26, 1
      %p49 = por %p47, %p48
      %p51 = scmp.ne.s32.totalorder %s34, %s50
      %p52 = scmp.eq.s32.totalorder %s26, 0
      %p53 = por %p51, %p52
      %s55 = sadd.s32 %s54, 1
      %p58 = scmp.eq.s32.totalorder %s20, 1
      %p59 = scmp.ne.s32.totalorder %s54, %s56
      %p60 = scmp.eq.s32.totalorder %s20, 0
      %p61 = por %p59, %p60
      %p62 = scmp.ne.s32.totalorder %s54, %s56
      %p63 = scmp.eq.s32.totalorder %s25, 1
      %p64 = por %p62, %p63
      %p65 = scmp.ne.s32.totalorder %s56, %s57
      %p66 = scmp.eq.s32.totalorder %s25, 0
      %p67 = por %p65, %p66
      %p68 = scmp.ne.s32.totalorder %s56, %s57
      %p69 = scmp.eq.s32.totalorder %s26, 1
      %p70 = por %p68, %p69
      %p72 = scmp.ne.s32.totalorder %s57, %s71
      %p73 = scmp.eq.s32.totalorder %s26, 0
      %p74 = por %p72, %p73
      %s76 = sadd.s32 %s75, 1
      %p79 = scmp.eq.s32.totalorder %s20, 1
      %p80 = scmp.ne.s32.totalorder %s75, %s77
      %p81 = scmp.eq.s32.totalorder %s20, 0
      %p82 = por %p80, %p81
      %p83 = scmp.ne.s32.totalorder %s75, %s77
      %p84 = scmp.eq.s32.totalorder %s25, 1
      %p85 = por %p83, %p84
      %p86 = scmp.ne.s32.totalorder %s77, %s78
      %p87 = scmp.eq.s32.totalorder %s25, 0
      %p88 = por %p86, %p87
      %p89 = scmp.ne.s32.totalorder %s77, %s78
      %p90 = scmp.eq.s32.totalorder %s26, 1
      %p91 = por %p89, %p90
      %p93 = scmp.ne.s32.totalorder %s78, %s92
      %p94 = scmp.eq.s32.totalorder %s26, 0
      %p95 = por %p93, %p94
      %s97 = sadd.s32 %s96, 1
      %p100 = scmp.eq.s32.totalorder %s20, 1
      %p101 = scmp.ne.s32.totalorder %s96, %s98
      %p102 = scmp.eq.s32.totalorder %s20, 0
      %p103 = por %p101, %p102
      %p104 = scmp.ne.s32.totalorder %s96, %s98
      %p105 = scmp.eq.s32.totalorder %s25, 1
      %p106 = por %p104, %p105
      %p107 = scmp.ne.s32.totalorder %s98, %s99
      %p108 = scmp.eq.s32.totalorder %s25, 0
      %p109 = por %p107, %p108
      %p110 = scmp.ne.s32.totalorder %s98, %s99
      %p111 = scmp.eq.s32.totalorder %s26, 1
      %p112 = por %p110, %p111
      %p114 = scmp.ne.s32.totalorder %s99, %s113
      %p115 = scmp.eq.s32.totalorder %s26, 0
      %p116 = por %p114, %p115
      %s118 = sadd.s32 %s117, 1
      %p121 = scmp.eq.s32.totalorder %s20, 1
      %p122 = scmp.ne.s32.totalorder %s117, %s119
      %p123 = scmp.eq.s32.totalorder %s20, 0
      %p124 = por %p122, %p123
      %p125 = scmp.ne.s32.totalorder %s117, %s119
      %p126 = scmp.eq.s32.totalorder %s25, 1
      %p127 = por %p125, %p126
      %p128 = scmp.ne.s32.totalorder %s119, %s120
      %p129 = scmp.eq.s32.totalorder %s25, 0
      %p130 = por %p128, %p129
      %p131 = scmp.ne.s32.totalorder %s119, %s120
      %p132 = scmp.eq.s32.totalorder %s26, 1
      %p133 = por %p131, %p132
      %p135 = scmp.ne.s32.totalorder %s120, %s134
      %p136 = scmp.eq.s32.totalorder %s26, 0
      %p137 = por %p135, %p136
      %s139 = sadd.s32 %s138, 1
      %p142 = scmp.eq.s32.totalorder %s20, 1
      %p143 = scmp.ne.s32.totalorder %s138, %s140
      %p144 = scmp.eq.s32.totalorder %s20, 0
      %p145 = por %p143, %p144
      %p146 = scmp.ne.s32.totalorder %s138, %s140
      %p147 = scmp.eq.s32.totalorder %s25, 1
      %p148 = por %p146, %p147
      %p149 = scmp.ne.s32.totalorder %s140, %s141
      %p150 = scmp.eq.s32.totalorder %s25, 0
      %p151 = por %p149, %p150
      %p152 = scmp.ne.s32.totalorder %s140, %s141
      %p153 = scmp.eq.s32.totalorder %s26, 1
      %p154 = por %p152, %p153
      %p156 = scmp.ne.s32.totalorder %s141, %s155
      %p157 = scmp.eq.s32.totalorder %s26, 0
      %p158 = por %p156, %p157
      %s159 = ssub.s32 %s20, %s27
      %p160 = scmp.eq.s32.totalorder %s159, 0
      %s162 = sadd.s32 %s161, 1
      %s163 = scalar_select %p160, %s161, %s162
      %p166 = pneg %p160
      %p167 = scmp.eq.s32.totalorder %s20, 1
      %p168 = por %p166, %p167
      %p169 = scmp.ne.s32.totalorder %s161, %s164
      %p170 = scmp.eq.s32.totalorder %s20, 0
      %p171 = por %p169, %p170
      %p172 = scmp.ne.s32.totalorder %s161, %s164
      %p173 = scmp.eq.s32.totalorder %s25, 1
      %p174 = por %p172, %p173
      %p175 = scmp.ne.s32.totalorder %s164, %s165
      %p176 = scmp.eq.s32.totalorder %s25, 0
      %p177 = por %p175, %p176
      %p178 = scmp.ne.s32.totalorder %s164, %s165
      %p179 = scmp.eq.s32.totalorder %s26, 1
      %p180 = por %p178, %p179
      %p182 = scmp.ne.s32.totalorder %s165, %s181
      %p183 = scmp.eq.s32.totalorder %s26, 0
      %p184 = por %p182, %p183
      %p185 = scmp.le.s32.totalorder 1, %s20
      %p186 = scmp.lt.s32.totalorder %s20, 3
      %p187 = pnand %p185, %p186
      %p188 = pneg %p187
      // Predicated region
      $region9: #{tpu_custom_call.1} parent=5 // pred_check
        _
      $region10: #{tpu_custom_call.1} parent=5 // pred_check_branch
        %190 = sbr.rel (%p187) target = $region12
      $region11: #{tpu_custom_call.1} parent=5 // pred_region
        %s191 = ssub.s32 %s20, 1
        // Predicated region
        $region13: #{tpu_custom_call.1} parent=11 // pred_check
          %p192 = pneg %p67
        $region14: #{tpu_custom_call.1} parent=11 // pred_check_branch
          %194 = sbr.rel (%p192) target = $region16
        $region15: #{tpu_custom_call.1} parent=11 // pred_region
          %s196 = ssub.s32 4096, 4096
          %197 = vsyncadd [#allocation6], %s196
          %s198 = sshll.u32 [#allocation5], 4
          %s199 = int_to_ptr.vmem [resolvable:$true] %s198
          %204 = dma.hbm_to_vmem [thread:$0]  %s1, 4096, %s199, [#allocation6], 128, 128, 8
        $region16: #{tpu_custom_call.1} parent=11 // pred_fallthru
          _
        // Predicated region
        $region17: #{tpu_custom_call.1} parent=11 // pred_check
          %p205 = pneg %p88
        $region18: #{tpu_custom_call.1} parent=11 // pred_check_branch
          %207 = sbr.rel (%p205) target = $region20
        $region19: #{tpu_custom_call.1} parent=11 // pred_region
          %s209 = ssub.s32 4096, 4096
          %210 = vsyncadd [#allocation6], %s209
          %s211 = sshll.u32 [#allocation7], 4
          %s212 = int_to_ptr.vmem [resolvable:$true] %s211
          %217 = dma.hbm_to_vmem [thread:$0]  %s2, 4096, %s212, [#allocation6], 256, 256, 16
        $region20: #{tpu_custom_call.1} parent=11 // pred_fallthru
          _
        // Predicated region
        $region21: #{tpu_custom_call.1} parent=11 // pred_check
          %p218 = pneg %p109
        $region22: #{tpu_custom_call.1} parent=11 // pred_check_branch
          %220 = sbr.rel (%p218) target = $region24
        $region23: #{tpu_custom_call.1} parent=11 // pred_region
          _
        $region24: #{tpu_custom_call.1} parent=11 // pred_fallthru
          _
        // Predicated region
        $region25: #{tpu_custom_call.1} parent=11 // pred_check
          %p221 = pneg %p130
        $region26: #{tpu_custom_call.1} parent=11 // pred_check_branch
          %223 = sbr.rel (%p221) target = $region28
        $region27: #{tpu_custom_call.1} parent=11 // pred_region
          _
        $region28: #{tpu_custom_call.1} parent=11 // pred_fallthru
          _
        // Predicated region
        $region29: #{tpu_custom_call.1} parent=11 // pred_check
          %p224 = pneg %p151
        $region30: #{tpu_custom_call.1} parent=11 // pred_check_branch
          %226 = sbr.rel (%p224) target = $region32
        $region31: #{tpu_custom_call.1} parent=11 // pred_region
          %s228 = ssub.s32 256, 256
          %229 = vsyncadd [#allocation9], %s228
          %s230 = sshll.u32 [#allocation8], 4
          %s231 = int_to_ptr.vmem [resolvable:$true] %s230
          %236 = dma.hbm_to_vmem [thread:$0]  %s5, 256, %s231, [#allocation9], 128, 128, 8
        $region32: #{tpu_custom_call.1} parent=11 // pred_fallthru
          _
      $region12: #{tpu_custom_call.1} parent=5 // pred_fallthru
        _
      %p237 = scmp.lt.s32.totalorder %s20, 2
      // Predicated region
      $region33: #{tpu_custom_call.1} parent=5 // pred_check
        %p238 = pneg %p237
      $region34: #{tpu_custom_call.1} parent=5 // pred_check_branch
        %240 = sbr.rel (%p238) target = $region36
      $region35: #{tpu_custom_call.1} parent=5 // pred_region
        // Predicated region
        $region37: #{tpu_custom_call.1} parent=35 // pred_check
          %p241 = pneg %p40
        $region38: #{tpu_custom_call.1} parent=35 // pred_check_branch
          %243 = sbr.rel (%p241) target = $region40
        $region39: #{tpu_custom_call.1} parent=35 // pred_region
          %s244 = sand.u32 %s30, 1
          %s245 = scalar_lea.sflag [#allocation3], %s244
          %s246 = sand.u32 %s30, 1
          %s247 = smul.addr %s246, 32
          %s248 = scalar_lea.vmem [#allocation2], %s247
          %s250 = ssub.s32 512, 512
          %251 = vsyncadd %s245, %s250
          %s252 = smul.addr %s20, 4
          %s253 = smul.addr %s252, 128
          %s254 = scalar_lea.hbm %s0, %s253
          %s255 = sshll.u32 %s248, 4
          %s256 = int_to_ptr.vmem [resolvable:$true] %s255
          %261 = dma.hbm_to_vmem [thread:$0]  %s254, 512, %s256, %s245, 256, 256, 16
        $region40: #{tpu_custom_call.1} parent=35 // pred_fallthru
          _
      $region36: #{tpu_custom_call.1} parent=5 // pred_fallthru
        _
      %p262 = scmp.le.s32.totalorder 1, %s20
      %p263 = scmp.lt.s32.totalorder %s20, 3
      %p264 = pnand %p262, %p263
      %p265 = pneg %p264
      // Predicated region
      $region41: #{tpu_custom_call.1} parent=5 // pred_check
        _
      $region42: #{tpu_custom_call.1} parent=5 // pred_check_branch
        %267 = sbr.rel (%p264) target = $region44
      $region43: #{tpu_custom_call.1} parent=5 // pred_region
        %s268 = ssub.s32 %s20, 1
        %s269 = sand.u32 %s33, 1
        %s270 = scalar_lea.sflag [#allocation3], %s269
        %s271 = sand.u32 %s33, 1
        %s272 = smul.addr %s271, 32
        %s273 = scalar_lea.vmem [#allocation2], %s272
        // Predicated region
        $region45: #{tpu_custom_call.1} parent=43 // pred_check
          %p274 = pneg %p46
        $region46: #{tpu_custom_call.1} parent=43 // pred_check_branch
          %276 = sbr.rel (%p274) target = $region48
        $region47: #{tpu_custom_call.1} parent=43 // pred_region
          %277 = dma.done %s270, 512
        $region48: #{tpu_custom_call.1} parent=43 // pred_fallthru
          _
        // Predicated region
        $region49: #{tpu_custom_call.1} parent=43 // pred_check
          %p278 = pneg %p67
        $region50: #{tpu_custom_call.1} parent=43 // pred_check_branch
          %280 = sbr.rel (%p278) target = $region52
        $region51: #{tpu_custom_call.1} parent=43 // pred_region
          %281 = dma.done [#allocation6], 4096
        $region52: #{tpu_custom_call.1} parent=43 // pred_fallthru
          _
        // Predicated region
        $region53: #{tpu_custom_call.1} parent=43 // pred_check
          %p282 = pneg %p88
        $region54: #{tpu_custom_call.1} parent=43 // pred_check_branch
          %284 = sbr.rel (%p282) target = $region56
        $region55: #{tpu_custom_call.1} parent=43 // pred_region
          %285 = dma.done [#allocation6], 4096
        $region56: #{tpu_custom_call.1} parent=43 // pred_fallthru
          _
        // Predicated region
        $region57: #{tpu_custom_call.1} parent=43 // pred_check
          %p286 = pneg %p151
        $region58: #{tpu_custom_call.1} parent=43 // pred_check_branch
          %288 = sbr.rel (%p286) target = $region60
        $region59: #{tpu_custom_call.1} parent=43 // pred_region
          %289 = dma.done [#allocation9], 256
        $region60: #{tpu_custom_call.1} parent=43 // pred_fallthru
          _
        %s290 = sand.u32 %s33, 1
        %s291 = scalar_lea.sflag [#allocation3], %s290
        %s292 = sand.u32 %s33, 1
        %s293 = smul.addr %s292, 32
        %s294 = scalar_lea.vmem [#allocation2], %s293
        %p295 = pneg %p46
        %p296 = pneg %p43
        %p297 = pneg %p67
        %p298 = pneg %p64
        %p299 = pneg %p88
        %p300 = pneg %p85
        %p301 = pneg %p109
        %p302 = pneg %p106
        %p303 = pneg %p130
        %p304 = pneg %p127
        %p305 = pneg %p151
        %p306 = pneg %p148
        %p307 = pneg %p177
        %p308 = pneg %p174
        %s309 = sand.u32 %s164, 1
        %s310 = scalar_lea.sflag [#allocation4], %s309
        %s311 = sand.u32 %s164, 1
        %s312 = smul.addr %s311, 64
        %s313 = scalar_lea.vmem [#allocation10], %s312
        %v314 = vld [vmem:[%s273] sm:$0xff]
        %v315 = vld [vmem:[%s273 + $0x8] sm:$0xff]
        %v316 = vld [vmem:[%s273 + $0x10] sm:$0xff]
        %v317 = vld [vmem:[%s273 + $0x18] sm:$0xff]
        %v318 = vld [vmem:[#allocation5] sm:$0xff]
        %v319 = vld [vmem:[#allocation5 + $0x8] sm:$0xff]
        %v320 = vld [vmem:[#allocation5 + $0x10] sm:$0xff]
        %v321 = vld [vmem:[#allocation5 + $0x18] sm:$0xff]
        %v322 = vld [vmem:[#allocation5 + $0x20] sm:$0xff]
        %v323 = vld [vmem:[#allocation5 + $0x28] sm:$0xff]
        %v324 = vld [vmem:[#allocation5 + $0x30] sm:$0xff]
        %v325 = vld [vmem:[#allocation5 + $0x38] sm:$0xff]
        %v326 = vld [vmem:[#allocation5 + $0x40] sm:$0xff]
        %v327 = vld [vmem:[#allocation5 + $0x48] sm:$0xff]
        %v328 = vld [vmem:[#allocation5 + $0x50] sm:$0xff]
        %v329 = vld [vmem:[#allocation5 + $0x58] sm:$0xff]
        %v330 = vld [vmem:[#allocation5 + $0x60] sm:$0xff]
        %v331 = vld [vmem:[#allocation5 + $0x68] sm:$0xff]
        %v332 = vld [vmem:[#allocation5 + $0x70] sm:$0xff]
        %v333 = vld [vmem:[#allocation5 + $0x78] sm:$0xff]
        %v334 = vld [vmem:[#allocation5 + $0x80] sm:$0xff]
        %v335 = vld [vmem:[#allocation5 + $0x88] sm:$0xff]
        %v336 = vld [vmem:[#allocation5 + $0x90] sm:$0xff]
        %v337 = vld [vmem:[#allocation5 + $0x98] sm:$0xff]
        %v338 = vld [vmem:[#allocation5 + $0xa0] sm:$0xff]
        %v339 = vld [vmem:[#allocation5 + $0xa8] sm:$0xff]
        %v340 = vld [vmem:[#allocation5 + $0xb0] sm:$0xff]
        %v341 = vld [vmem:[#allocation5 + $0xb8] sm:$0xff]
        %v342 = vld [vmem:[#allocation5 + $0xc0] sm:$0xff]
        %v343 = vld [vmem:[#allocation5 + $0xc8] sm:$0xff]
        %v344 = vld [vmem:[#allocation5 + $0xd0] sm:$0xff]
        %v345 = vld [vmem:[#allocation5 + $0xd8] sm:$0xff]
        %v346 = vld [vmem:[#allocation5 + $0xe0] sm:$0xff]
        %v347 = vld [vmem:[#allocation5 + $0xe8] sm:$0xff]
        %v348 = vld [vmem:[#allocation5 + $0xf0] sm:$0xff]
        %v349 = vld [vmem:[#allocation5 + $0xf8] sm:$0xff]
        %350 = vmatprep.subr.mxu0 0.0
        %351 = vmatpush1.msra.mxu0 %v333
        %352 = vmatprep.subr.mxu0 0.0
        %353 = vmatpush1.msra.mxu0 %v332
        %354 = vmatprep.subr.mxu0 0.0
        %355 = vmatpush1.msra.mxu0 %v331
        %356 = vmatprep.subr.mxu0 0.0
        %357 = vmatpush1.msra.mxu0 %v330
        %358 = vmatprep.subr.mxu0 0.0
        %359 = vmatpush1.msra.mxu0 %v329
        %360 = vmatprep.subr.mxu0 0.0
        %361 = vmatpush1.msra.mxu0 %v328
        %362 = vmatprep.subr.mxu0 0.0
        %363 = vmatpush1.msra.mxu0 %v327
        %364 = vmatprep.subr.mxu0 0.0
        %365 = vmatpush1.msra.mxu0 %v326
        %366 = vmatprep.subr.mxu0 0.0
        %367 = vmatpush1.msra.mxu0 %v325
        %368 = vmatprep.subr.mxu0 0.0
        %369 = vmatpush1.msra.mxu0 %v324
        %370 = vmatprep.subr.mxu0 0.0
        %371 = vmatpush1.msra.mxu0 %v323
        %372 = vmatprep.subr.mxu0 0.0
        %373 = vmatpush1.msra.mxu0 %v322
        %374 = vmatprep.subr.mxu0 0.0
        %375 = vmatpush1.msra.mxu0 %v321
        %376 = vmatprep.subr.mxu0 0.0
        %377 = vmatpush1.msra.mxu0 %v320
        %378 = vmatprep.subr.mxu0 0.0
        %379 = vmatpush1.msra.mxu0 %v319
        %380 = vmatprep.subr.mxu0 0.0
        %381 = vmatpush1.msra.mxu0 %v318
        %382 = vmatprep.subr.mxu0 0.0
        %383 = vmatpush2.msra.mxu0 %v349
        %384 = vmatprep.subr.mxu0 0.0
        %385 = vmatpush2.msra.mxu0 %v348
        %386 = vmatprep.subr.mxu0 0.0
        %387 = vmatpush2.msra.mxu0 %v347
        %388 = vmatprep.subr.mxu0 0.0
        %389 = vmatpush2.msra.mxu0 %v346
        %390 = vmatprep.subr.mxu0 0.0
        %391 = vmatpush2.msra.mxu0 %v345
        %392 = vmatprep.subr.mxu0 0.0
        %393 = vmatpush2.msra.mxu0 %v344
        %394 = vmatprep.subr.mxu0 0.0
        %395 = vmatpush2.msra.mxu0 %v343
        %396 = vmatprep.subr.mxu0 0.0
        %397 = vmatpush2.msra.mxu0 %v342
        %398 = vmatprep.subr.mxu0 0.0
        %399 = vmatpush2.msra.mxu0 %v341
        %400 = vmatprep.subr.mxu0 0.0
        %401 = vmatpush2.msra.mxu0 %v340
        %402 = vmatprep.subr.mxu0 0.0
        %403 = vmatpush2.msra.mxu0 %v339
        %404 = vmatprep.subr.mxu0 0.0
        %405 = vmatpush2.msra.mxu0 %v338
        %406 = vmatprep.subr.mxu0 0.0
        %407 = vmatpush2.msra.mxu0 %v337
        %408 = vmatprep.subr.mxu0 0.0
        %409 = vmatpush2.msra.mxu0 %v336
        %410 = vmatprep.subr.mxu0 0.0
        %411 = vmatpush2.msra.mxu0 %v335
        %412 = vmatprep.subr.mxu0 0.0
        %413 = vmatpush2.msra.mxu0 %v334
        %414 = vmatprep.mubr.f32.mxu0 %v315
        %415 = vmatmul.mubr.f32.gmra.mxu0 %v314
        %v416 = vpop.f32.mrf.mxu0
        %v417 = vadd.f32 0.0, %v416
        %v418 = vpop.f32.mrf.mxu0
        %419 = vmatprep.mubr.f32.mxu0 %v317
        %420 = vmatmul.mubr.f32.gmra.mxu0 %v316
        %v421 = vpop.f32.mrf.mxu0
        %v422 = vadd.f32 0.0, %v421
        %v423 = vpop.f32.mrf.mxu0
        %424 = vdwg.mxu0
        %v425 = vld [vmem:[%s3] sm:$0xff]
        %v426 = vld [vmem:[%s3 + $0x8] sm:$0xff]
        %v427 = vld [vmem:[%s4] sm:$0xff]
        %v428 = vld [vmem:[%s4 + $0x8] sm:$0xff]
        %v429 = vld [vmem:[#allocation8] sm:$0xff]
        %v430 = vld [vmem:[#allocation8 + $0x8] sm:$0xff]
        %v431 = vld [vmem:[#allocation7] sm:$0xff]
        %v432 = vld [vmem:[#allocation7 + $0x8] sm:$0xff]
        %v433 = vld [vmem:[#allocation7 + $0x10] sm:$0xff]
        %v434 = vld [vmem:[#allocation7 + $0x18] sm:$0xff]
        %v435 = vld [vmem:[#allocation7 + $0x20] sm:$0xff]
        %v436 = vld [vmem:[#allocation7 + $0x28] sm:$0xff]
        %v437 = vld [vmem:[#allocation7 + $0x30] sm:$0xff]
        %v438 = vld [vmem:[#allocation7 + $0x38] sm:$0xff]
        %v439 = vld [vmem:[#allocation7 + $0x40] sm:$0xff]
        %v440 = vld [vmem:[#allocation7 + $0x48] sm:$0xff]
        %v441 = vld [vmem:[#allocation7 + $0x50] sm:$0xff]
        %v442 = vld [vmem:[#allocation7 + $0x58] sm:$0xff]
        %v443 = vld [vmem:[#allocation7 + $0x60] sm:$0xff]
        %v444 = vld [vmem:[#allocation7 + $0x68] sm:$0xff]
        %v445 = vld [vmem:[#allocation7 + $0x70] sm:$0xff]
        %v446 = vld [vmem:[#allocation7 + $0x78] sm:$0xff]
        %v447 = vld [vmem:[#allocation7 + $0x80] sm:$0xff]
        %v448 = vld [vmem:[#allocation7 + $0x88] sm:$0xff]
        %v449 = vld [vmem:[#allocation7 + $0x90] sm:$0xff]
        %v450 = vld [vmem:[#allocation7 + $0x98] sm:$0xff]
        %v451 = vld [vmem:[#allocation7 + $0xa0] sm:$0xff]
        %v452 = vld [vmem:[#allocation7 + $0xa8] sm:$0xff]
        %v453 = vld [vmem:[#allocation7 + $0xb0] sm:$0xff]
        %v454 = vld [vmem:[#allocation7 + $0xb8] sm:$0xff]
        %v455 = vld [vmem:[#allocation7 + $0xc0] sm:$0xff]
        %v456 = vld [vmem:[#allocation7 + $0xc8] sm:$0xff]
        %v457 = vld [vmem:[#allocation7 + $0xd0] sm:$0xff]
        %v458 = vld [vmem:[#allocation7 + $0xd8] sm:$0xff]
        %v459 = vld [vmem:[#allocation7 + $0xe0] sm:$0xff]
        %v460 = vld [vmem:[#allocation7 + $0xe8] sm:$0xff]
        %v461 = vld [vmem:[#allocation7 + $0xf0] sm:$0xff]
        %v462 = vld [vmem:[#allocation7 + $0xf8] sm:$0xff]
        %464 = vset.pattern.permute.xlu0 0
        %465 = vperm.xlu0 %464, %v427
        %v466 = vpop.permute.xlu0 %465
        %469 = vset.pattern.permute.xlu0 0
        %470 = vperm.xlu0 %469, %v428
        %v471 = vpop.permute.xlu0 %470
        %vm473 = vcmask 130048
        %v475 = vsel %vm473, %v425, 0
        %v478 = vsel %vm473, %v426, 0
        %480 = vmatprep.subr.mxu0 0.0
        %481 = vmatpush1.msra.mxu0 0.0
        %482 = vmatprep.subr.mxu0 0.0
        %483 = vmatpush1.msra.mxu0 0.0
        %484 = vmatprep.subr.mxu0 0.0
        %485 = vmatpush1.msra.mxu0 0.0
        %486 = vmatprep.subr.mxu0 0.0
        %487 = vmatpush1.msra.mxu0 0.0
        %488 = vmatprep.subr.mxu0 0.0
        %489 = vmatpush1.msra.mxu0 0.0
        %490 = vmatprep.subr.mxu0 0.0
        %491 = vmatpush1.msra.mxu0 0.0
        %492 = vmatprep.subr.mxu0 0.0
        %493 = vmatpush1.msra.mxu0 0.0
        %494 = vmatprep.subr.mxu0 0.0
        %495 = vmatpush1.msra.mxu0 0.0
        %496 = vmatprep.subr.mxu0 0.0
        %497 = vmatpush1.msra.mxu0 0.0
        %498 = vmatprep.subr.mxu0 0.0
        %499 = vmatpush1.msra.mxu0 0.0
        %500 = vmatprep.subr.mxu0 0.0
        %501 = vmatpush1.msra.mxu0 0.0
        %502 = vmatprep.subr.mxu0 0.0
        %503 = vmatpush1.msra.mxu0 0.0
        %504 = vmatprep.subr.mxu0 0.0
        %505 = vmatpush1.msra.mxu0 0.0
        %506 = vmatprep.subr.mxu0 0.0
        %507 = vmatpush1.msra.mxu0 0.0
        %508 = vmatprep.subr.mxu0 0.0
        %509 = vmatpush1.msra.mxu0 %v422
        %510 = vmatprep.subr.mxu0 0.0
        %511 = vmatpush1.msra.mxu0 %v417
        %512 = vmatprep.subr.mxu0 0.0
        %513 = vmatpush2.msra.mxu0 0.0
        %514 = vmatprep.subr.mxu0 0.0
        %515 = vmatpush2.msra.mxu0 0.0
        %516 = vmatprep.subr.mxu0 0.0
        %517 = vmatpush2.msra.mxu0 0.0
        %518 = vmatprep.subr.mxu0 0.0
        %519 = vmatpush2.msra.mxu0 0.0
        %520 = vmatprep.subr.mxu0 0.0
        %521 = vmatpush2.msra.mxu0 0.0
        %522 = vmatprep.subr.mxu0 0.0
        %523 = vmatpush2.msra.mxu0 0.0
        %524 = vmatprep.subr.mxu0 0.0
        %525 = vmatpush2.msra.mxu0 0.0
        %526 = vmatprep.subr.mxu0 0.0
        %527 = vmatpush2.msra.mxu0 0.0
        %528 = vmatprep.subr.mxu0 0.0
        %529 = vmatpush2.msra.mxu0 0.0
        %530 = vmatprep.subr.mxu0 0.0
        %531 = vmatpush2.msra.mxu0 0.0
        %532 = vmatprep.subr.mxu0 0.0
        %533 = vmatpush2.msra.mxu0 0.0
        %534 = vmatprep.subr.mxu0 0.0
        %535 = vmatpush2.msra.mxu0 0.0
        %536 = vmatprep.subr.mxu0 0.0
        %537 = vmatpush2.msra.mxu0 0.0
        %538 = vmatprep.subr.mxu0 0.0
        %539 = vmatpush2.msra.mxu0 0.0
        %540 = vmatprep.subr.mxu0 0.0
        %541 = vmatpush2.msra.mxu0 0.0
        %542 = vmatprep.subr.mxu0 0.0
        %543 = vmatpush2.msra.mxu0 0.0
        %544 = vmatprep.mubr.f32.mxu0 0.0
        %545 = vmatmul.mubr.f32.gmra.mxu0 %v475
        %v546 = vpop.f32.mrf.mxu0
        %v547 = vadd.f32 %v466, %v546
        %v548 = vpop.f32.mrf.mxu0
        %549 = vmatprep.mubr.f32.mxu0 0.0
        %550 = vmatmul.mubr.f32.gmra.mxu0 %v478
        %v551 = vpop.f32.mrf.mxu0
        %v552 = vadd.f32 %v471, %v551
        %v553 = vpop.f32.mrf.mxu0
        %554 = vdwg.mxu0
        %v555 = vmax.f32 %v547, 0.0
        %v556 = vmax.f32 %v552, 0.0
        %v557 = vmul.f32 %v555, %v429
        %v558 = vmul.f32 %v556, %v430
        %559 = vmatprep.subr.mxu0 %v462
        %560 = vmatpush1.msra.mxu0 %v461
        %561 = vmatprep.subr.mxu0 %v460
        %562 = vmatpush1.msra.mxu0 %v459
        %563 = vmatprep.subr.mxu0 %v458
        %564 = vmatpush1.msra.mxu0 %v457
        %565 = vmatprep.subr.mxu0 %v456
        %566 = vmatpush1.msra.mxu0 %v455
        %567 = vmatprep.subr.mxu0 %v454
        %568 = vmatpush1.msra.mxu0 %v453
        %569 = vmatprep.subr.mxu0 %v452
        %570 = vmatpush1.msra.mxu0 %v451
        %571 = vmatprep.subr.mxu0 %v450
        %572 = vmatpush1.msra.mxu0 %v449
        %573 = vmatprep.subr.mxu0 %v448
        %574 = vmatpush1.msra.mxu0 %v447
        %575 = vmatprep.subr.mxu0 %v446
        %576 = vmatpush1.msra.mxu0 %v445
        %577 = vmatprep.subr.mxu0 %v444
        %578 = vmatpush1.msra.mxu0 %v443
        %579 = vmatprep.subr.mxu0 %v442
        %580 = vmatpush1.msra.mxu0 %v441
        %581 = vmatprep.subr.mxu0 %v440
        %582 = vmatpush1.msra.mxu0 %v439
        %583 = vmatprep.subr.mxu0 %v438
        %584 = vmatpush1.msra.mxu0 %v437
        %585 = vmatprep.subr.mxu0 %v436
        %586 = vmatpush1.msra.mxu0 %v435
        %587 = vmatprep.subr.mxu0 %v434
        %588 = vmatpush1.msra.mxu0 %v433
        %589 = vmatprep.subr.mxu0 %v432
        %590 = vmatpush1.msra.mxu0 %v431
        %591 = vmatprep.subr.mxu0 0.0
        %592 = vmatpush2.msra.mxu0 0.0
        %593 = vmatprep.subr.mxu0 0.0
        %594 = vmatpush2.msra.mxu0 0.0
        %595 = vmatprep.subr.mxu0 0.0
        %596 = vmatpush2.msra.mxu0 0.0
        %597 = vmatprep.subr.mxu0 0.0
        %598 = vmatpush2.msra.mxu0 0.0
        %599 = vmatprep.subr.mxu0 0.0
        %600 = vmatpush2.msra.mxu0 0.0
        %601 = vmatprep.subr.mxu0 0.0
        %602 = vmatpush2.msra.mxu0 0.0
        %603 = vmatprep.subr.mxu0 0.0
        %604 = vmatpush2.msra.mxu0 0.0
        %605 = vmatprep.subr.mxu0 0.0
        %606 = vmatpush2.msra.mxu0 0.0
        %607 = vmatprep.subr.mxu0 0.0
        %608 = vmatpush2.msra.mxu0 0.0
        %609 = vmatprep.subr.mxu0 0.0
        %610 = vmatpush2.msra.mxu0 0.0
        %611 = vmatprep.subr.mxu0 0.0
        %612 = vmatpush2.msra.mxu0 0.0
        %613 = vmatprep.subr.mxu0 0.0
        %614 = vmatpush2.msra.mxu0 0.0
        %615 = vmatprep.subr.mxu0 0.0
        %616 = vmatpush2.msra.mxu0 0.0
        %617 = vmatprep.subr.mxu0 0.0
        %618 = vmatpush2.msra.mxu0 0.0
        %619 = vmatprep.subr.mxu0 0.0
        %620 = vmatpush2.msra.mxu0 0.0
        %621 = vmatprep.subr.mxu0 0.0
        %622 = vmatpush2.msra.mxu0 0.0
        %623 = vmatprep.mubr.f32.mxu0 0.0
        %624 = vmatmul.mubr.f32.gmra.mxu0 %v557
        %v625 = vpop.f32.mrf.mxu0
        %v626 = vadd.f32 0.0, %v625
        %v627 = vpop.f32.mrf.mxu0
        %v628 = vadd.f32 0.0, %v627
        %629 = vmatprep.mubr.f32.mxu0 0.0
        %630 = vmatmul.mubr.f32.gmra.mxu0 %v558
        %v631 = vpop.f32.mrf.mxu0
        %v632 = vadd.f32 0.0, %v631
        %v633 = vpop.f32.mrf.mxu0
        %v634 = vadd.f32 0.0, %v633
        %635 = vdwg.mxu0
        %636 = vst [vmem:[%s313] sm:$0xff] %v314
        %637 = vst [vmem:[%s313 + $0x8] sm:$0xff] %v315
        %638 = vst [vmem:[%s313 + $0x10] sm:$0xff] %v316
        %639 = vst [vmem:[%s313 + $0x18] sm:$0xff] %v317
        %640 = vst [vmem:[%s313 + $0x20] sm:$0xff] %v626
        %641 = vst [vmem:[%s313 + $0x28] sm:$0xff] %v628
        %642 = vst [vmem:[%s313 + $0x30] sm:$0xff] %v632
        %643 = vst [vmem:[%s313 + $0x38] sm:$0xff] %v634
        %s644 = sand.u32 %s164, 1
        %s645 = scalar_lea.sflag [#allocation4], %s644
        %s646 = sand.u32 %s164, 1
        %s647 = smul.addr %s646, 64
        %s648 = scalar_lea.vmem [#allocation10], %s647
        // Predicated region
        $region61: #{tpu_custom_call.1} parent=43 // pred_check
          %p649 = pneg %p174
        $region62: #{tpu_custom_call.1} parent=43 // pred_check_branch
          %651 = sbr.rel (%p649) target = $region64
        $region63: #{tpu_custom_call.1} parent=43 // pred_region
          %s653 = ssub.s32 1024, 1024
          %654 = vsyncadd %s645, %s653
          %s655 = smul.addr %s25, 8
          %s656 = smul.addr %s655, 128
          %s657 = scalar_lea.hbm %s6, %s656
          %s658 = sshll.u32 %s648, 4
          %s659 = int_to_ptr.vmem [resolvable:$true] %s658
          %664 = dma.vmem_to_hbm [thread:$0]  %s659, 1024, %s657, %s645, 256, 256, 16
        $region64: #{tpu_custom_call.1} parent=43 // pred_fallthru
          _
      $region44: #{tpu_custom_call.1} parent=5 // pred_fallthru
        _
      %p665 = scmp.le.s32.totalorder 2, %s20
      // Predicated region
      $region65: #{tpu_custom_call.1} parent=5 // pred_check
        %p666 = pneg %p665
      $region66: #{tpu_custom_call.1} parent=5 // pred_check_branch
        %668 = sbr.rel (%p666) target = $region68
      $region67: #{tpu_custom_call.1} parent=5 // pred_region
        %s669 = ssub.s32 %s20, 2
        // Predicated region
        $region69: #{tpu_custom_call.1} parent=67 // pred_check
          %p670 = pneg %p180
        $region70: #{tpu_custom_call.1} parent=67 // pred_check_branch
          %672 = sbr.rel (%p670) target = $region72
        $region71: #{tpu_custom_call.1} parent=67 // pred_region
          %s673 = sand.u32 %s165, 1
          %s674 = scalar_lea.sflag [#allocation4], %s673
          %s675 = sand.u32 %s165, 1
          %s676 = smul.addr %s675, 64
          %s677 = scalar_lea.vmem [#allocation10], %s676
          %678 = dma.done %s674, 1024
        $region72: #{tpu_custom_call.1} parent=67 // pred_fallthru
          _
      $region68: #{tpu_custom_call.1} parent=5 // pred_fallthru
        _
    $region6: #{tpu_custom_call.1} parent=1 // loop_footer
      %s24 = sadd.s32 1, %s20
    $region7: #{tpu_custom_call.1} parent=1 // loop_footer_branch
      %19 = sbr.rel target = $region3
    $region8: #{tpu_custom_call.1} parent=1 // loop_exit
      _
    %679 = vsyncpa [#allocation3], 1
    %s680 = scalar_lea.sflag [#allocation3], 1
    %681 = vsyncpa %s680, 1
    %682 = vsyncpa [#allocation6], 1
    %683 = vsyncpa [#allocation9], 1
    %684 = vsyncpa [#allocation4], 1
    %s685 = scalar_lea.sflag [#allocation4], 1
    %686 = vsyncpa %s685, 1

</llo_original>
